<compile_context>
chip_gen: v5e
topology: v5e:2x2
jax: 0.10.0
libtpu: 0.0.40
codegen_flags: <defaults>
</compile_context>

<pallas_src>
import functools

import jax
import jax.numpy as jnp
from jax.experimental import pallas as pl
from jax.experimental.pallas import tpu as pltpu

LANE = 128


def _sublane_unit(dtype):
    # f32 -> 8, bf16 -> 16, int8/bool -> 32 (packed-dtype sublane tiling).
    return max(8, 32 // jnp.dtype(dtype).itemsize)


def _combo_kernel(x_ref, t_ref, acc_ref, *, tile_r):
    @pl.when(pl.program_id(0) == 0)
    def _():
        acc_ref[...] = jnp.zeros_like(acc_ref)

    x = x_ref[...].astype(jnp.float32)  # (tile_r, LANE) logits
    t = t_ref[...].astype(jnp.float32)  # (tile_r, LANE) targets

    p = jax.nn.sigmoid(x)
    # BCEWithLogits (stable): max(x,0) - x*t + log1p(exp(-|x|))
    #                       = max(x,0) - x*t - log(max(p, 1-p))
    bce = jnp.maximum(x, 0.0) - x * t - jnp.log(jnp.maximum(p, 1.0 - p))

    def fold(v):
        # (tile_r, LANE) -> (8, LANE) per-lane partial sums; pure VPU adds,
        # no cross-lane (XLU) reduction inside the hot loop. The reshape splits
        # the sublane dim on an 8-boundary, so it is layout-preserving.
        return jnp.sum(v.reshape(tile_r // 8, 8, LANE), axis=0)

    # Accumulate directly into static slices (free views) of the resident
    # accumulator — no (32, 128) concatenate temp.
    acc_ref[0:8, :] += fold(p * t)    # intersection partial
    acc_ref[8:16, :] += fold(p)       # sum(sigmoid) partial
    acc_ref[16:24, :] += fold(t)      # sum(targets) partial
    acc_ref[24:32, :] += fold(bce)    # sum(bce) partial


def combo_loss_binary(inputs, targets, *, alpha=0.7, beta=0.3, smooth=1e-6,
                      tile_rows=4096):
    """JAX/Pallas equivalent of ComboLossBinary.forward. Returns a scalar."""
    x = inputs.reshape(-1)            # free bitcast; keep native dtype
    t = targets.reshape(-1)
    if t.dtype == jnp.bool_:
        t = t.astype(jnp.int8)        # narrow integer, not a full f32 pass
    n = x.shape[0]

    sub = max(_sublane_unit(x.dtype), _sublane_unit(t.dtype))
    rows = n // LANE                                  # complete 128-lane rows
    tile_r = min(tile_rows, (rows // sub) * sub)      # multiple of sublane unit

    inter = sump = sumt = bce_sum = jnp.zeros((), jnp.float32)
    n_main = 0

    if tile_r >= sub:                                 # static (shape-derived)
        steps = rows // tile_r
        rows_main = steps * tile_r
        n_main = rows_main * LANE

        if n == rows * LANE:
            # Flat size divisible by 128: pure bitcast reshape, zero HBM copy.
            # The grid only visits the first rows_main rows; the remainder
            # rows are handled in the jnp epilogue below.
            x2 = x.reshape(rows, LANE)
            t2 = t.reshape(rows, LANE)
        else:
            # TODO(synk): ragged flat sizes need a contiguous-prefix slice to
            # get a 2-D lane-dense view; prefer inputs whose flattened size is
            # a multiple of 128 to keep this path fully zero-copy.
            x2 = x[: rows * LANE].reshape(rows, LANE)
            t2 = t[: rows * LANE].reshape(rows, LANE)

        in_spec = pl.BlockSpec((tile_r, LANE), lambda k: (k, 0))
        partials = pl.pallas_call(
            functools.partial(_combo_kernel, tile_r=tile_r),
            out_shape=jax.ShapeDtypeStruct((32, LANE), jnp.float32),
            grid_spec=pltpu.PrefetchScalarGridSpec(
                num_scalar_prefetch=0,
                grid=(steps,),
                in_specs=[in_spec, in_spec],
                out_specs=pl.BlockSpec((32, LANE), lambda k: (0, 0)),
            ),
            compiler_params=pltpu.CompilerParams(
                dimension_semantics=("arbitrary",)),
        )(x2, t2)

        sums = partials.reshape(4, 8 * LANE).sum(axis=1)  # tiny epilogue reduce
        inter, sump, sumt, bce_sum = sums[0], sums[1], sums[2], sums[3]

    if n_main < n:
        # Ragged tail (< one tile): plain jnp, single small pass.
        xt = x[n_main:].astype(jnp.float32)
        tt = t[n_main:].astype(jnp.float32)
        pt = jax.nn.sigmoid(xt)
        bt = jnp.maximum(xt, 0.0) - xt * tt - jnp.log(jnp.maximum(pt, 1.0 - pt))
        inter = inter + jnp.sum(pt * tt)
        sump = sump + jnp.sum(pt)
        sumt = sumt + jnp.sum(tt)
        bce_sum = bce_sum + jnp.sum(bt)

    dice = (2.0 * inter + smooth) / (sump + sumt + smooth)
    bce_mean = bce_sum / float(n)
    return alpha * (1.0 - dice) + beta * bce_mean


def _reference(inputs, targets, alpha=0.7, beta=0.3, smooth=1e-6):
    x = inputs.reshape(-1).astype(jnp.float32)
    t = targets.reshape(-1).astype(jnp.float32)
    p = jax.nn.sigmoid(x)
    inter = jnp.sum(p * t)
    union = jnp.sum(p) + jnp.sum(t)
    dice = (2.0 * inter + smooth) / (union + smooth)
    bce = jnp.mean(jnp.maximum(x, 0.0) - x * t + jnp.log1p(jnp.exp(-jnp.abs(x))))
    return alpha * (1.0 - dice) + beta * bce


if __name__ == "__main__":
    key = jax.random.PRNGKey(0)
    k1, k2 = jax.random.split(key)

    # Small binary-segmentation-head shape: (B, C, H, W); 128-divisible flat
    # size -> fully zero-copy kernel path.
    inputs = jax.random.normal(k1, (2, 4, 16, 16), dtype=jnp.float32)
    targets = jax.random.bernoulli(k2, 0.5, (2, 4, 16, 16)).astype(jnp.float32)
    loss = jax.block_until_ready(jax.jit(combo_loss_binary)(inputs, targets))
    ref = _reference(inputs, targets)
    assert jnp.allclose(loss, ref, rtol=1e-5, atol=1e-5), (loss, ref)

    # Odd-sized case: kernel on the aligned prefix + jnp ragged tail.
    k3, k4 = jax.random.split(k2)
    inputs2 = jax.random.normal(k3, (2, 3, 17, 13), dtype=jnp.float32)
    targets2 = jax.random.bernoulli(k4, 0.5, (2, 3, 17, 13)).astype(jnp.float32)
    loss2 = jax.block_until_ready(jax.jit(combo_loss_binary)(inputs2, targets2))
    ref2 = _reference(inputs2, targets2)
    assert jnp.allclose(loss2, ref2, rtol=1e-5, atol=1e-5), (loss2, ref2)

    # Narrow-dtype case: bf16 logits + bool targets stay narrow through the DMA.
    k5, k6 = jax.random.split(k4)
    inputs3 = jax.random.normal(k5, (4, 2, 32, 32), dtype=jnp.bfloat16)
    targets3 = jax.random.bernoulli(k6, 0.5, (4, 2, 32, 32))
    loss3 = jax.block_until_ready(jax.jit(combo_loss_binary)(inputs3, targets3))
    ref3 = _reference(inputs3, targets3)
    assert jnp.allclose(loss3, ref3, rtol=1e-4, atol=1e-4), (loss3, ref3)

    print("KERNEL_OK")
</pallas_src>

<mosaic_0001>
module attributes {stable_mosaic.version = 11 : i64} {
  func.func @_combo_kernel(%arg0: i32, %arg1: memref<16x128xf32, #tpu.memory_space<vmem>>, %arg2: memref<16x128xf32, #tpu.memory_space<vmem>>, %arg3: memref<32x128xf32, #tpu.memory_space<vmem>>) attributes {dimension_semantics = [#tpu.dimension_semantics<arbitrary>], iteration_bounds = array<i64: 1>, scalar_prefetch = 0 : i64, scratch_operands = 0 : i64, tpu.core_type = #tpu.core_type<tc>, window_params = [{transform_indices = @transform_0, window_bounds = array<i64: 16, 128>}, {transform_indices = @transform_1, window_bounds = array<i64: 16, 128>}, {pipeline_mode = #tpu.pipeline_mode<synchronous>, transform_indices = @transform_2, window_bounds = array<i64: 32, 128>}]} {
    %c0_i32 = arith.constant 0 : i32
    %0 = arith.cmpi eq, %arg0, %c0_i32 : i32
    %1 = arith.extui %0 : i1 to i32
    %c0_i32_0 = arith.constant 0 : i32
    %2 = arith.cmpi ne, %1, %c0_i32_0 : i32
    scf.if %2 {
      %cst_23 = arith.constant 0.000000e+00 : f32
      %40 = vector.broadcast %cst_23 : f32 to vector<32x128xf32>
      %c0_24 = arith.constant 0 : index
      %c0_25 = arith.constant 0 : index
      %41 = vector.load %arg3[%c0_24, %c0_25] : memref<32x128xf32, #tpu.memory_space<vmem>>, vector<32x128xf32>
      tpu.vector_store %arg3[%c0_24, %c0_25], %40 {strides = array<i32>} : memref<32x128xf32, #tpu.memory_space<vmem>>, vector<32x128xf32>,
    } else {
    }
    %c0 = arith.constant 0 : index
    %c0_1 = arith.constant 0 : index
    %3 = vector.load %arg1[%c0, %c0_1] : memref<16x128xf32, #tpu.memory_space<vmem>>, vector<16x128xf32>
    %c0_2 = arith.constant 0 : index
    %c0_3 = arith.constant 0 : index
    %4 = vector.load %arg2[%c0_2, %c0_3] : memref<16x128xf32, #tpu.memory_space<vmem>>, vector<16x128xf32>
    %5 = arith.negf %3 : vector<16x128xf32>
    %6 = math.exp %5 : vector<16x128xf32>
    %cst = arith.constant 1.000000e+00 : f32
    %7 = vector.broadcast %cst : f32 to vector<16x128xf32>
    %8 = arith.addf %7, %6 : vector<16x128xf32>
    %9 = arith.divf %7, %8 : vector<16x128xf32>
    %cst_4 = arith.constant 0.000000e+00 : f32
    %10 = vector.broadcast %cst_4 : f32 to vector<16x128xf32>
    %11 = arith.maximumf %3, %10 : vector<16x128xf32>
    %12 = arith.mulf %3, %4 : vector<16x128xf32>
    %13 = arith.subf %11, %12 : vector<16x128xf32>
    %cst_5 = arith.constant 1.000000e+00 : f32
    %14 = vector.broadcast %cst_5 : f32 to vector<16x128xf32>
    %15 = arith.subf %14, %9 : vector<16x128xf32>
    %16 = arith.maximumf %9, %15 : vector<16x128xf32>
    %17 = math.log %16 : vector<16x128xf32>
    %18 = arith.subf %13, %17 : vector<16x128xf32>
    %c0_6 = arith.constant 0 : index
    %c0_7 = arith.constant 0 : index
    %19 = vector.load %arg3[%c0_6, %c0_7] : memref<32x128xf32, #tpu.memory_space<vmem>>, vector<8x128xf32>
    %20 = arith.mulf %9, %4 : vector<16x128xf32>
    %21 = vector.shape_cast %20 : vector<16x128xf32> to vector<2x8x128xf32>
    %cst_8 = arith.constant dense<0.000000e+00> : vector<8x128xf32>
    %22 = vector.multi_reduction <add>, %21, %cst_8 [0] : vector<2x8x128xf32> to vector<8x128xf32>
    %23 = arith.addf %19, %22 : vector<8x128xf32>
    %c0_9 = arith.constant 0 : index
    %c0_10 = arith.constant 0 : index
    %24 = vector.load %arg3[%c0_9, %c0_10] : memref<32x128xf32, #tpu.memory_space<vmem>>, vector<8x128xf32>
    tpu.vector_store %arg3[%c0_9, %c0_10], %23 {strides = array<i32>} : memref<32x128xf32, #tpu.memory_space<vmem>>, vector<8x128xf32>,
    %c8 = arith.constant 8 : index
    %c0_11 = arith.constant 0 : index
    %25 = vector.load %arg3[%c8, %c0_11] : memref<32x128xf32, #tpu.memory_space<vmem>>, vector<8x128xf32>
    %26 = vector.shape_cast %9 : vector<16x128xf32> to vector<2x8x128xf32>
    %cst_12 = arith.constant dense<0.000000e+00> : vector<8x128xf32>
    %27 = vector.multi_reduction <add>, %26, %cst_12 [0] : vector<2x8x128xf32> to vector<8x128xf32>
    %28 = arith.addf %25, %27 : vector<8x128xf32>
    %c8_13 = arith.constant 8 : index
    %c0_14 = arith.constant 0 : index
    %29 = vector.load %arg3[%c8_13, %c0_14] : memref<32x128xf32, #tpu.memory_space<vmem>>, vector<8x128xf32>
    tpu.vector_store %arg3[%c8_13, %c0_14], %28 {strides = array<i32>} : memref<32x128xf32, #tpu.memory_space<vmem>>, vector<8x128xf32>,
    %c16 = arith.constant 16 : index
    %c0_15 = arith.constant 0 : index
    %30 = vector.load %arg3[%c16, %c0_15] : memref<32x128xf32, #tpu.memory_space<vmem>>, vector<8x128xf32>
    %31 = vector.shape_cast %4 : vector<16x128xf32> to vector<2x8x128xf32>
    %cst_16 = arith.constant dense<0.000000e+00> : vector<8x128xf32>
    %32 = vector.multi_reduction <add>, %31, %cst_16 [0] : vector<2x8x128xf32> to vector<8x128xf32>
    %33 = arith.addf %30, %32 : vector<8x128xf32>
    %c16_17 = arith.constant 16 : index
    %c0_18 = arith.constant 0 : index
    %34 = vector.load %arg3[%c16_17, %c0_18] : memref<32x128xf32, #tpu.memory_space<vmem>>, vector<8x128xf32>
    tpu.vector_store %arg3[%c16_17, %c0_18], %33 {strides = array<i32>} : memref<32x128xf32, #tpu.memory_space<vmem>>, vector<8x128xf32>,
    %c24 = arith.constant 24 : index
    %c0_19 = arith.constant 0 : index
    %35 = vector.load %arg3[%c24, %c0_19] : memref<32x128xf32, #tpu.memory_space<vmem>>, vector<8x128xf32>
    %36 = vector.shape_cast %18 : vector<16x128xf32> to vector<2x8x128xf32>
    %cst_20 = arith.constant dense<0.000000e+00> : vector<8x128xf32>
    %37 = vector.multi_reduction <add>, %36, %cst_20 [0] : vector<2x8x128xf32> to vector<8x128xf32>
    %38 = arith.addf %35, %37 : vector<8x128xf32>
    %c24_21 = arith.constant 24 : index
    %c0_22 = arith.constant 0 : index
    %39 = vector.load %arg3[%c24_21, %c0_22] : memref<32x128xf32, #tpu.memory_space<vmem>>, vector<8x128xf32>
    tpu.vector_store %arg3[%c24_21, %c0_22], %38 {strides = array<i32>} : memref<32x128xf32, #tpu.memory_space<vmem>>, vector<8x128xf32>,
    return
  }
  func.func @transform_0(%arg0: i32) -> (i32, i32) {
    %c0_i32 = arith.constant 0 : i32
    %c0_i32_0 = arith.constant 0 : i32
    return %arg0, %c0_i32 : i32, i32
  }
  func.func @transform_1(%arg0: i32) -> (i32, i32) {
    %c0_i32 = arith.constant 0 : i32
    %c0_i32_0 = arith.constant 0 : i32
    return %arg0, %c0_i32 : i32, i32
  }
  func.func @transform_2(%arg0: i32) -> (i32, i32) {
    %c0_i32 = arith.constant 0 : i32
    %c0_i32_0 = arith.constant 0 : i32
    %c0_i32_1 = arith.constant 0 : i32
    return %c0_i32, %c0_i32_0 : i32, i32
  }
}

</mosaic_0001>

<llo_original>
// kernel: combo_loss_binary.1
$region0: #{combo_loss_binary.1}
  #allocation0 [shape = 'u32[]', space=smem, size = 0x4, offset = 0x4, fixed_abs, tag = 'smem constant byte address 0x4 - core index']
  #allocation1 [shape = 'u32[72,128]{1,0:T(1,128)}', space=vmem, size = 0x9000, scoped, tag = 'internal scratch']
  %s0 = inlined_call_operand.vmem [shape: f32[16,128], index: 0, kind: input, shape index: {}]
  %s1 = inlined_call_operand.vmem [shape: f32[16,128], index: 1, kind: input, shape index: {}]
  %s2 = inlined_call_operand.vmem [shape: f32[32,128], index: 2, kind: output, shape index: {}]
  %s3 = sld [smem:[#allocation0]]
  $region22: #{combo_loss_binary.1} parent=0
    _
  %s5 = ssub.s32 1, %s3
  %s6 = scalar_select 0, %s5, %s3
  // Predicated region
  $region2: #{combo_loss_binary.1} parent=0 // pred_check
    _
  $region3: #{combo_loss_binary.1} parent=0 // pred_check_branch
    %8 = sbr.rel (0) target = $region5
  $region4: #{combo_loss_binary.1} parent=0 // pred_region
    _
  $region5: #{combo_loss_binary.1} parent=0 // pred_fallthru
    _
  // Predicated region
  $region6: #{combo_loss_binary.1} parent=0 // pred_check
    _
  $region7: #{combo_loss_binary.1} parent=0 // pred_check_branch
    %10 = sbr.rel (0) target = $region9
  $region8: #{combo_loss_binary.1} parent=0 // pred_region
    _
  $region9: #{combo_loss_binary.1} parent=0 // pred_fallthru
    _
  %p11 = scmp.eq.s32.totalorder 0, 0
  // Predicated region
  $region10: #{combo_loss_binary.1} parent=0 // pred_check
    %p12 = pneg %p11
  $region11: #{combo_loss_binary.1} parent=0 // pred_check_branch
    %14 = sbr.rel (%p12) target = $region13
  $region12: #{combo_loss_binary.1} parent=0 // pred_region
    %15 = vst [vmem:[%s2] sm:$0xff] 0.0
    %16 = vst [vmem:[%s2 + $0x8] sm:$0xff] 0.0
    %17 = vst [vmem:[%s2 + $0x10] sm:$0xff] 0.0
    %18 = vst [vmem:[%s2 + $0x18] sm:$0xff] 0.0
  $region13: #{combo_loss_binary.1} parent=0 // pred_fallthru
    _
  %v19 = vld [vmem:[%s0] sm:$0xff]
  %v20 = vld [vmem:[%s0 + $0x8] sm:$0xff]
  %v21 = vld [vmem:[%s1] sm:$0xff]
  %v22 = vld [vmem:[%s1 + $0x8] sm:$0xff]
  %v23 = vxor.u32 %v19, 2147483648
  %v24 = vxor.u32 %v20, 2147483648
  %v25 = vmul.f32 %v23, 1.442695
  %v26 = vpow.pop %v25
  %v27 = vmul.f32 %v24, 1.442695
  %v28 = vpow.pop %v27
  %v29 = vadd.f32 %v26, 1.0
  %v30 = vadd.f32 %v28, 1.0
  %v31 = vrcp.pop %v29
  %v32 = vmul.f32 %v29, %v31
  %v33 = vsub.f32 1.0, %v32
  %v34 = vmul.f32 %v31, %v33
  %v35 = vadd.f32 %v31, %v34
  %vm36 = vweird.f32 %v29
  %vm37 = vweird.f32 %v31
  %vm38 = vmor %vm36, %vm37
  %v39 = vsel %vm38, %v31, %v35
  %v40 = vand.u32 2147483647, %v29
  %vm41 = vcmp.eq.f32.partialorder %v40, 8.507059e+37
  %v42 = vand.u32 %v29, 2147483648
  %v43 = vor.u32 1.1754944e-38, %v42
  %v44 = vsel %vm41, %v43, %v39
  %v45 = vmul.f32 1.0, %v44
  %v46 = vrcp.pop %v30
  %v47 = vmul.f32 %v30, %v46
  %v48 = vsub.f32 1.0, %v47
  %v49 = vmul.f32 %v46, %v48
  %v50 = vadd.f32 %v46, %v49
  %vm51 = vweird.f32 %v30
  %vm52 = vweird.f32 %v46
  %vm53 = vmor %vm51, %vm52
  %v54 = vsel %vm53, %v46, %v50
  %v55 = vand.u32 2147483647, %v30
  %vm56 = vcmp.eq.f32.partialorder %v55, 8.507059e+37
  %v57 = vand.u32 %v30, 2147483648
  %v58 = vor.u32 1.1754944e-38, %v57
  %v59 = vsel %vm56, %v58, %v54
  %v60 = vmul.f32 1.0, %v59
  %v61 = vmax.f32 %v19, 0.0
  %v62 = vmax.f32 %v20, 0.0
  %v63 = vmul.f32 %v19, %v21
  %v64 = vmul.f32 %v20, %v22
  %v65 = vsub.f32 %v61, %v63
  %v66 = vsub.f32 %v62, %v64
  %v67 = vsub.f32 1.0, %v45
  %v68 = vsub.f32 1.0, %v60
  %v69 = vmax.f32 %v45, %v67
  %v70 = vmax.f32 %v60, %v68
  %v71 = vlog2.pop %v69
  %v72 = vmul.f32 %v71, 0.6931472
  %v73 = vlog2.pop %v70
  %v74 = vmul.f32 %v73, 0.6931472
  %v75 = vsub.f32 %v65, %v72
  %v76 = vsub.f32 %v66, %v74
  %v77 = vld [vmem:[%s2] sm:$0xff]
  %v78 = vmul.f32 %v45, %v21
  %v79 = vmul.f32 %v60, %v22
  %v80 = vadd.f32 %v78, %v79
  %v81 = vadd.f32 %v77, %v80
  %82 = vst [vmem:[%s2] sm:$0xff] %v81
  %v83 = vld [vmem:[%s2 + $0x8] sm:$0xff]
  %v84 = vadd.f32 %v45, %v60
  %v85 = vadd.f32 %v83, %v84
  %86 = vst [vmem:[%s2 + $0x8] sm:$0xff] %v85
  %v87 = vld [vmem:[%s2 + $0x10] sm:$0xff]
  %v88 = vadd.f32 %v21, %v22
  %v89 = vadd.f32 %v87, %v88
  %90 = vst [vmem:[%s2 + $0x10] sm:$0xff] %v89
  %v91 = vld [vmem:[%s2 + $0x18] sm:$0xff]
  %v92 = vadd.f32 %v75, %v76
  %v93 = vadd.f32 %v91, %v92
  %94 = vst [vmem:[%s2 + $0x18] sm:$0xff] %v93
  // Predicated region
  $region14: #{combo_loss_binary.1} parent=0 // pred_check
    _
  $region15: #{combo_loss_binary.1} parent=0 // pred_check_branch
    %96 = sbr.rel (0) target = $region17
  $region16: #{combo_loss_binary.1} parent=0 // pred_region
    _
  $region17: #{combo_loss_binary.1} parent=0 // pred_fallthru
    _
  // Predicated region
  $region18: #{combo_loss_binary.1} parent=0 // pred_check
    _
  $region19: #{combo_loss_binary.1} parent=0 // pred_check_branch
    %98 = sbr.rel (0) target = $region21
  $region20: #{combo_loss_binary.1} parent=0 // pred_region
    _
  $region21: #{combo_loss_binary.1} parent=0 // pred_fallthru
    _

</llo_original>
